<compile_context>
chip_gen: v5e
topology: v5e:2x2
jax: 0.10.0
libtpu: 0.0.40
codegen_flags: <defaults>
</compile_context>

<pallas_src>
import jax
import jax.numpy as jnp
from jax.experimental import pallas as pl
from jax.experimental.pallas import tpu as pltpu


# ----------------------------------------------------------------------------
# Kernel: two split-K block-diagonal matmuls + ReLU + one tiny matmul.
# ----------------------------------------------------------------------------
def _acp_kernel(vx_ref, vh_ref, w1x_ref, w1h_ref, b1_ref, w2_ref, b2_ref, o_ref):
    # vx_ref : (B, A*E)         vh_ref : (B, A*Hd)
    # w1x_ref: (A*E,  A*Hd)     w1h_ref: (A*Hd, A*Hd)   (block-diagonal)
    # b1_ref : (1, A*Hd)
    # w2_ref : (A*Hd, A*2)      (block-diagonal)         b2_ref: (1, A*2)
    # o_ref  : (B, A*2)
    h = (jnp.dot(vx_ref[...], w1x_ref[...], preferred_element_type=jnp.float32)
         + jnp.dot(vh_ref[...], w1h_ref[...], preferred_element_type=jnp.float32)
         + b1_ref[...])
    h = jnp.maximum(h, 0.0)                                   # ReLU, (B, A*Hd)

    logits = (jnp.dot(h, w2_ref[...], preferred_element_type=jnp.float32)
              + b2_ref[...])                                  # (B, A*2), lane-packed
    o_ref[...] = logits.astype(o_ref.dtype)                   # single store


# ----------------------------------------------------------------------------
# One-time parameter layout prep (hoist out of the per-forward path).
# ----------------------------------------------------------------------------
def _block_diag(blocks):
    """blocks: (A, r, c) -> block-diagonal (A*r, A*c)."""
    A, r, c = blocks.shape
    out = jnp.zeros((A * r, A * c), blocks.dtype)
    for a in range(A):  # A is tiny and static
        out = out.at[a * r:(a + 1) * r, a * c:(a + 1) * c].set(blocks[a])
    return out


def prepare_acp_params(W1, b1, W2, b2):
    """
    W1: (A, E+Hd, Hd)   b1: (A, Hd)   W2: (A, Hd, 2)   b2: (A, 2)
    Returns block-diagonal / flattened parameters for the fused kernel.
    Call once at init time, not per forward call.
    """
    A, EH, Hd = W1.shape
    E = EH - Hd
    W1x_bd = _block_diag(W1[:, :E, :])          # (A*E,  A*Hd)
    W1h_bd = _block_diag(W1[:, E:, :])          # (A*Hd, A*Hd)
    W2_bd = _block_diag(W2)                     # (A*Hd, A*2)
    b1_flat = b1.reshape(1, A * Hd)             # (1, A*Hd)
    b2_flat = b2.reshape(1, A * 2)              # (1, A*2)
    return (W1x_bd, W1h_bd, b1_flat, W2_bd, b2_flat)


# ----------------------------------------------------------------------------
# Forward pass.
# ----------------------------------------------------------------------------
@jax.jit
def aspect_category_prediction(v_X, v_H, W1x_bd, W1h_bd, b1_flat, W2_bd, b2_flat):
    """
    v_X: (B, A, E)   v_H: (B, A, Hd)   + prepared params from prepare_acp_params.
    returns logits: (B, A, 2)
    """
    B, A, E = v_X.shape
    Hd = v_H.shape[-1]
    A2 = A * 2

    # Free contiguous reshapes: lane-dense activation slabs.
    vx_flat = v_X.reshape(B, A * E)             # (B, A*E)
    vh_flat = v_H.reshape(B, A * Hd)            # (B, A*Hd)

    vmem = pl.BlockSpec(memory_space=pltpu.MemorySpace.VMEM)
    out_flat = pl.pallas_call(
        _acp_kernel,
        out_shape=jax.ShapeDtypeStruct((B, A2), v_X.dtype),
        in_specs=[vmem] * 7,                    # whole arrays in VMEM, no grid
        out_specs=vmem,
    )(vx_flat, vh_flat, W1x_bd, W1h_bd, b1_flat, W2_bd, b2_flat)

    # Free view: column 2a+t of the slab is logit t of aspect a.
    return out_flat.reshape(B, A, 2)


# ----------------------------------------------------------------------------
# Pure-JAX reference (mirrors the PyTorch module).
# ----------------------------------------------------------------------------
def _reference(v_X, v_H, W1, b1, W2, b2):
    V = jnp.concatenate([v_X, v_H], axis=-1)          # (B, A, E+Hd)
    V = jnp.transpose(V, (1, 0, 2))                   # (A, B, E+Hd)
    out1 = jnp.einsum("abe,aeh->abh", V, W1) + b1[:, None, :]
    out1 = jnp.maximum(out1, 0.0)
    logits = jnp.einsum("abh,aht->abt", out1, W2) + b2[:, None, :]
    return jnp.transpose(logits, (1, 0, 2))           # (B, A, 2)


if __name__ == "__main__":
    # Small shapes consistent with the module's forward.
    B, A, E, Hd = 8, 2, 32, 32

    key = jax.random.PRNGKey(0)
    k1, k2, k3, k4, k5, k6 = jax.random.split(key, 6)

    v_X = jax.random.normal(k1, (B, A, E), dtype=jnp.float32)
    v_H = jax.random.normal(k2, (B, A, Hd), dtype=jnp.float32)

    # Deterministic parameter init (module's __init__ gives the shapes).
    W1 = jax.random.normal(k3, (A, E + Hd, Hd), dtype=jnp.float32) * 0.1
    b1 = jax.random.normal(k4, (A, Hd), dtype=jnp.float32) * 0.1
    W2 = jax.random.normal(k5, (A, Hd, 2), dtype=jnp.float32) * 0.1
    b2 = jax.random.normal(k6, (A, 2), dtype=jnp.float32) * 0.1

    # One-time parameter layout prep (would live at module-init time).
    params = prepare_acp_params(W1, b1, W2, b2)

    out = aspect_category_prediction(v_X, v_H, *params)
    out = jax.block_until_ready(out)

    ref = _reference(v_X, v_H, W1, b1, W2, b2)
    assert out.shape == (B, A, 2), out.shape
    assert jnp.allclose(out, ref, atol=1e-4, rtol=1e-4), float(
        jnp.max(jnp.abs(out - ref))
    )

    print("KERNEL_OK")
</pallas_src>

<mosaic_0001>
module attributes {stable_mosaic.version = 11 : i64} {
  func.func @_acp_kernel(%arg0: memref<8x64xf32, #tpu.memory_space<vmem>>, %arg1: memref<8x64xf32, #tpu.memory_space<vmem>>, %arg2: memref<64x64xf32, #tpu.memory_space<vmem>>, %arg3: memref<64x64xf32, #tpu.memory_space<vmem>>, %arg4: memref<1x64xf32, #tpu.memory_space<vmem>>, %arg5: memref<64x4xf32, #tpu.memory_space<vmem>>, %arg6: memref<1x4xf32, #tpu.memory_space<vmem>>, %arg7: memref<8x4xf32, #tpu.memory_space<vmem>>) attributes {dimension_semantics = [], scalar_prefetch = 0 : i64, scratch_operands = 0 : i64, tpu.core_type = #tpu.core_type<tc>} {
    %c0 = arith.constant 0 : index
    %c0_0 = arith.constant 0 : index
    %0 = vector.load %arg0[%c0, %c0_0] : memref<8x64xf32, #tpu.memory_space<vmem>>, vector<8x64xf32>
    %c0_1 = arith.constant 0 : index
    %c0_2 = arith.constant 0 : index
    %1 = vector.load %arg2[%c0_1, %c0_2] : memref<64x64xf32, #tpu.memory_space<vmem>>, vector<64x64xf32>
    %cst = arith.constant dense<0.000000e+00> : vector<8x64xf32>
    %2 = tpu.matmul %0, %1, %cst {dimension_numbers = #tpu.dot_dimension_numbers<[1], [0], [0], [1], [0, 0, 1, 1], [], []>} : vector<8x64xf32>, vector<64x64xf32>, vector<8x64xf32> -> vector<8x64xf32>
    %c0_3 = arith.constant 0 : index
    %c0_4 = arith.constant 0 : index
    %3 = vector.load %arg1[%c0_3, %c0_4] : memref<8x64xf32, #tpu.memory_space<vmem>>, vector<8x64xf32>
    %c0_5 = arith.constant 0 : index
    %c0_6 = arith.constant 0 : index
    %4 = vector.load %arg3[%c0_5, %c0_6] : memref<64x64xf32, #tpu.memory_space<vmem>>, vector<64x64xf32>
    %cst_7 = arith.constant dense<0.000000e+00> : vector<8x64xf32>
    %5 = tpu.matmul %3, %4, %cst_7 {dimension_numbers = #tpu.dot_dimension_numbers<[1], [0], [0], [1], [0, 0, 1, 1], [], []>} : vector<8x64xf32>, vector<64x64xf32>, vector<8x64xf32> -> vector<8x64xf32>
    %6 = arith.addf %2, %5 : vector<8x64xf32>
    %c0_8 = arith.constant 0 : index
    %c0_9 = arith.constant 0 : index
    %7 = vector.load %arg4[%c0_8, %c0_9] : memref<1x64xf32, #tpu.memory_space<vmem>>, vector<1x64xf32>
    %8 = vector.broadcast %7 : vector<1x64xf32> to vector<8x64xf32>
    %9 = arith.addf %6, %8 : vector<8x64xf32>
    %cst_10 = arith.constant 0.000000e+00 : f32
    %10 = vector.broadcast %cst_10 : f32 to vector<8x64xf32>
    %11 = arith.maximumf %9, %10 : vector<8x64xf32>
    %c0_11 = arith.constant 0 : index
    %c0_12 = arith.constant 0 : index
    %12 = vector.load %arg5[%c0_11, %c0_12] : memref<64x4xf32, #tpu.memory_space<vmem>>, vector<64x4xf32>
    %cst_13 = arith.constant dense<0.000000e+00> : vector<8x4xf32>
    %13 = tpu.matmul %11, %12, %cst_13 {dimension_numbers = #tpu.dot_dimension_numbers<[1], [0], [0], [1], [0, 0, 1, 1], [], []>} : vector<8x64xf32>, vector<64x4xf32>, vector<8x4xf32> -> vector<8x4xf32>
    %c0_14 = arith.constant 0 : index
    %c0_15 = arith.constant 0 : index
    %14 = vector.load %arg6[%c0_14, %c0_15] : memref<1x4xf32, #tpu.memory_space<vmem>>, vector<1x4xf32>
    %15 = vector.broadcast %14 : vector<1x4xf32> to vector<8x4xf32>
    %16 = arith.addf %13, %15 : vector<8x4xf32>
    %c0_16 = arith.constant 0 : index
    %c0_17 = arith.constant 0 : index
    %17 = vector.load %arg7[%c0_16, %c0_17] : memref<8x4xf32, #tpu.memory_space<vmem>>, vector<8x4xf32>
    tpu.vector_store %arg7[%c0_16, %c0_17], %16 {strides = array<i32>} : memref<8x4xf32, #tpu.memory_space<vmem>>, vector<8x4xf32>,
    return
  }
}

</mosaic_0001>

<llo_original>
// kernel: aspect_category_prediction.1
$region0: #{aspect_category_prediction.1}
  #allocation0 [shape = 'u32[]', space=smem, size = 0x4, offset = 0x4, fixed_abs, tag = 'smem constant byte address 0x4 - core index']
  #allocation1 [shape = 'u32[72,128]{1,0:T(1,128)}', space=vmem, size = 0x9000, scoped, tag = 'internal scratch']
  %s0 = inlined_call_operand.vmem [shape: f32[8,64], index: 0, kind: input, shape index: {}]
  %s1 = inlined_call_operand.vmem [shape: f32[8,64], index: 1, kind: input, shape index: {}]
  %s2 = inlined_call_operand.vmem [shape: f32[64,64], index: 2, kind: input, shape index: {}]
  %s3 = inlined_call_operand.hbm [shape: f32[64,64], index: 3, kind: input, shape index: {}]
  %s4 = inlined_call_operand.vmem [shape: f32[1,64], index: 4, kind: input, shape index: {}]
  %s5 = inlined_call_operand.vmem [shape: f32[64,4], index: 5, kind: input, shape index: {}]
  %s6 = inlined_call_operand.vmem [shape: f32[1,4], index: 6, kind: input, shape index: {}]
  %s7 = inlined_call_operand.vmem [shape: f32[8,4], index: 7, kind: output, shape index: {}]
  %s8 = sld [smem:[#allocation0]]
  $region42: #{aspect_category_prediction.1} parent=0
    _
  %s10 = ssub.s32 1, %s8
  %s11 = scalar_select 0, %s10, %s8
  $region1: #{aspect_category_prediction.1} parent=0
    #allocation2 [shape = 'u8[32768]{0}', space=vmem, size = 0x8000, scoped, tag = 'input window, operand 3, single buffered']
    #allocation3 [shape = 's32[1]{0}', space=sflag, size = 0x4, scoped, tag = 'scoped memory for aspect_category_prediction.1']
    %12 = vsyncpa [#allocation3], 0
    // Predicated region
    $region2: #{aspect_category_prediction.1} parent=1 // pred_check
      _
    $region3: #{aspect_category_prediction.1} parent=1 // pred_check_branch
      %14 = sbr.rel (0) target = $region5
    $region4: #{aspect_category_prediction.1} parent=1 // pred_region
      _
    $region5: #{aspect_category_prediction.1} parent=1 // pred_fallthru
      _
    // Predicated region
    $region6: #{aspect_category_prediction.1} parent=1 // pred_check
      _
    $region7: #{aspect_category_prediction.1} parent=1 // pred_check_branch
      %16 = sbr.rel (0) target = $region9
    $region8: #{aspect_category_prediction.1} parent=1 // pred_region
      _
    $region9: #{aspect_category_prediction.1} parent=1 // pred_fallthru
      _
    // Predicated region
    $region10: #{aspect_category_prediction.1} parent=1 // pred_check
      _
    $region11: #{aspect_category_prediction.1} parent=1 // pred_check_branch
      %18 = sbr.rel (0) target = $region13
    $region12: #{aspect_category_prediction.1} parent=1 // pred_region
      _
    $region13: #{aspect_category_prediction.1} parent=1 // pred_fallthru
      _
    // Predicated region
    $region14: #{aspect_category_prediction.1} parent=1 // pred_check
      _
    $region15: #{aspect_category_prediction.1} parent=1 // pred_check_branch
      %20 = sbr.rel (0) target = $region17
    $region16: #{aspect_category_prediction.1} parent=1 // pred_region
      %22 = vsyncadd [#allocation3], 0
      %s23 = sshll.u32 %s3, 4
      %s24 = int_to_ptr.hbm [resolvable:$true] %s23
      %s25 = sshll.u32 [#allocation2], 4
      %s26 = int_to_ptr.vmem [resolvable:$true] %s25
      %31 = dma.hbm_to_vmem [thread:$0]  %s24, 1024, %s26, [#allocation3], 128, 128, 8
    $region17: #{aspect_category_prediction.1} parent=1 // pred_fallthru
      _
    // Predicated region
    $region18: #{aspect_category_prediction.1} parent=1 // pred_check
      _
    $region19: #{aspect_category_prediction.1} parent=1 // pred_check_branch
      %33 = sbr.rel (0) target = $region21
    $region20: #{aspect_category_prediction.1} parent=1 // pred_region
      _
    $region21: #{aspect_category_prediction.1} parent=1 // pred_fallthru
      _
    // Predicated region
    $region22: #{aspect_category_prediction.1} parent=1 // pred_check
      _
    $region23: #{aspect_category_prediction.1} parent=1 // pred_check_branch
      %35 = sbr.rel (0) target = $region25
    $region24: #{aspect_category_prediction.1} parent=1 // pred_region
      _
    $region25: #{aspect_category_prediction.1} parent=1 // pred_fallthru
      _
    // Predicated region
    $region26: #{aspect_category_prediction.1} parent=1 // pred_check
      _
    $region27: #{aspect_category_prediction.1} parent=1 // pred_check_branch
      %37 = sbr.rel (0) target = $region29
    $region28: #{aspect_category_prediction.1} parent=1 // pred_region
      _
    $region29: #{aspect_category_prediction.1} parent=1 // pred_fallthru
      _
    // Predicated region
    $region30: #{aspect_category_prediction.1} parent=1 // pred_check
      _
    $region31: #{aspect_category_prediction.1} parent=1 // pred_check_branch
      %39 = sbr.rel (0) target = $region33
    $region32: #{aspect_category_prediction.1} parent=1 // pred_region
      %41 = dma.done [#allocation3], 1024
    $region33: #{aspect_category_prediction.1} parent=1 // pred_fallthru
      _
    %v42 = vld [vmem:[%s0] sm:$0xff]
    %v43 = vld [vmem:[%s2] sm:$0xff]
    %v44 = vld [vmem:[%s2 + $0x8] sm:$0xff]
    %v45 = vld [vmem:[%s2 + $0x10] sm:$0xff]
    %v46 = vld [vmem:[%s2 + $0x18] sm:$0xff]
    %v47 = vld [vmem:[%s2 + $0x20] sm:$0xff]
    %v48 = vld [vmem:[%s2 + $0x28] sm:$0xff]
    %v49 = vld [vmem:[%s2 + $0x30] sm:$0xff]
    %v50 = vld [vmem:[%s2 + $0x38] sm:$0xff]
    %v51 = vld [vmem:[%s1] sm:$0xff]
    %v52 = vld [vmem:[#allocation2] sm:$0xff]
    %v53 = vld [vmem:[#allocation2 + $0x8] sm:$0xff]
    %v54 = vld [vmem:[#allocation2 + $0x10] sm:$0xff]
    %v55 = vld [vmem:[#allocation2 + $0x18] sm:$0xff]
    %v56 = vld [vmem:[#allocation2 + $0x20] sm:$0xff]
    %v57 = vld [vmem:[#allocation2 + $0x28] sm:$0xff]
    %v58 = vld [vmem:[#allocation2 + $0x30] sm:$0xff]
    %v59 = vld [vmem:[#allocation2 + $0x38] sm:$0xff]
    %vm60 = vcmask 523264
    %v62 = vsel %vm60, %v51, 0
    %64 = vmatpush.msra.mxu0 0.0
    %65 = vmatpush.msra.mxu0 0.0
    %66 = vmatpush.msra.mxu0 0.0
    %67 = vmatpush.msra.mxu0 0.0
    %68 = vmatpush.msra.mxu0 0.0
    %69 = vmatpush.msra.mxu0 0.0
    %70 = vmatpush.msra.mxu0 0.0
    %71 = vmatpush.msra.mxu0 0.0
    %72 = vmatpush.msra.mxu0 %v59
    %73 = vmatpush.msra.mxu0 %v58
    %74 = vmatpush.msra.mxu0 %v57
    %75 = vmatpush.msra.mxu0 %v56
    %76 = vmatpush.msra.mxu0 %v55
    %77 = vmatpush.msra.mxu0 %v54
    %78 = vmatpush.msra.mxu0 %v53
    %79 = vmatpush.msra.mxu0 %v52
    %80 = vmatmul.f32.gmra.mxu0 %v62
    %v81 = vpop.f32.mrf.mxu0
    %v82 = vadd.f32 0.0, %v81
    %83 = vdwg.mxu0
    %v85 = vsel %vm60, %v42, 0
    %87 = vmatpush.msra.mxu0 0.0
    %88 = vmatpush.msra.mxu0 0.0
    %89 = vmatpush.msra.mxu0 0.0
    %90 = vmatpush.msra.mxu0 0.0
    %91 = vmatpush.msra.mxu0 0.0
    %92 = vmatpush.msra.mxu0 0.0
    %93 = vmatpush.msra.mxu0 0.0
    %94 = vmatpush.msra.mxu0 0.0
    %95 = vmatpush.msra.mxu0 %v50
    %96 = vmatpush.msra.mxu0 %v49
    %97 = vmatpush.msra.mxu0 %v48
    %98 = vmatpush.msra.mxu0 %v47
    %99 = vmatpush.msra.mxu0 %v46
    %100 = vmatpush.msra.mxu0 %v45
    %101 = vmatpush.msra.mxu0 %v44
    %102 = vmatpush.msra.mxu0 %v43
    %103 = vmatmul.f32.gmra.mxu0 %v85
    %v104 = vpop.f32.mrf.mxu0
    %v105 = vadd.f32 %v82, %v104
    %106 = vdwg.mxu0
    %v107 = vld [vmem:[%s4] sm:$0x1]
    %v109 = vperm.slane %v107, 0
    %v111 = vadd.f32 %v105, %v109
    %v112 = vmax.f32 %v111, 0.0
    %v113 = vld [vmem:[%s5] sm:$0xff]
    %v114 = vld [vmem:[%s5 + $0x8] sm:$0xff]
    %v115 = vld [vmem:[%s5 + $0x10] sm:$0xff]
    %v116 = vld [vmem:[%s5 + $0x18] sm:$0xff]
    %v117 = vld [vmem:[%s5 + $0x20] sm:$0xff]
    %v118 = vld [vmem:[%s5 + $0x28] sm:$0xff]
    %v119 = vld [vmem:[%s5 + $0x30] sm:$0xff]
    %v120 = vld [vmem:[%s5 + $0x38] sm:$0xff]
    %v121 = vld [vmem:[%s6] sm:$0x1]
    %v123 = vperm.slane %v121, 0
    %v126 = vsel %vm60, %v112, 0
    %128 = vmatpush.msra.mxu0 0.0
    %129 = vmatpush.msra.mxu0 0.0
    %130 = vmatpush.msra.mxu0 0.0
    %131 = vmatpush.msra.mxu0 0.0
    %132 = vmatpush.msra.mxu0 0.0
    %133 = vmatpush.msra.mxu0 0.0
    %134 = vmatpush.msra.mxu0 0.0
    %135 = vmatpush.msra.mxu0 0.0
    %136 = vmatpush.msra.mxu0 %v120
    %137 = vmatpush.msra.mxu0 %v119
    %138 = vmatpush.msra.mxu0 %v118
    %139 = vmatpush.msra.mxu0 %v117
    %140 = vmatpush.msra.mxu0 %v116
    %141 = vmatpush.msra.mxu0 %v115
    %142 = vmatpush.msra.mxu0 %v114
    %143 = vmatpush.msra.mxu0 %v113
    %144 = vmatmul.f32.gmra.mxu0 %v126
    %v145 = vpop.f32.mrf.mxu0
    %v146 = vadd.f32 %v123, %v145
    %147 = vdwg.mxu0
    %vm148 = vcmask 31744
    %149 = vst.msk [vmem:[%s7] sm:$0xff] %vm148, %v146
    // Predicated region
    $region34: #{aspect_category_prediction.1} parent=1 // pred_check
      _
    $region35: #{aspect_category_prediction.1} parent=1 // pred_check_branch
      %151 = sbr.rel (0) target = $region37
    $region36: #{aspect_category_prediction.1} parent=1 // pred_region
      _
    $region37: #{aspect_category_prediction.1} parent=1 // pred_fallthru
      _
    // Predicated region
    $region38: #{aspect_category_prediction.1} parent=1 // pred_check
      _
    $region39: #{aspect_category_prediction.1} parent=1 // pred_check_branch
      %153 = sbr.rel (0) target = $region41
    $region40: #{aspect_category_prediction.1} parent=1 // pred_region
      _
    $region41: #{aspect_category_prediction.1} parent=1 // pred_fallthru
      _
    %154 = vsyncpa [#allocation3], 1

</llo_original>
